<compile_context>
chip_gen: v6e
topology: v6e:2x2x1
jax: 0.10.0
libtpu: 0.0.40
codegen_flags: <defaults>
</compile_context>

<pallas_src>
import jax
import jax.numpy as jnp
from jax import lax
from jax.experimental import pallas as pl
from jax.experimental.pallas import tpu as pltpu

_NEG_INF = -1e30  # finite "-inf": keeps fully-masked columns NaN-free


def _round_up(x, m):
    return ((x + m - 1) // m) * m


def _vmem_budget():
    """~75% of this generation's physical VMEM (v5e/v6e: 128 MiB, v7x: 64 MiB)."""
    try:
        cap = int(pltpu.get_tpu_info().vmem_capacity_bytes)
    except Exception:
        cap = 64 * 1024 * 1024  # conservative fallback = v7x per-core VMEM
    return cap * 3 // 4


def _vmem_limit(footprint, budget):
    # real per-step footprint with 2x headroom, never above the budget
    return int(min(budget, max(32 * 1024 * 1024, 2 * footprint)))


def _divisor_tiles(lp, cands):
    return [t for t in dict.fromkeys(cands) if t <= lp and lp % t == 0]


def _proj_footprint(cp, tl, x_bytes):
    f = 2 * cp * tl * x_bytes                 # x input blocks (double buffered)
    f += 2 * 3 * cp * cp * 2                  # fused weight (bf16, dbuf)
    f += 2 * 3 * cp * 4                       # bias (f32, dbuf)
    f += 2 * tl * cp * 2                      # Q output blocks (bf16)
    f += 2 * 2 * cp * tl * 2                  # K;V output blocks (bf16)
    f += 3 * cp * tl * 4 + tl * cp * 4        # f32 matmul result + transpose temp
    return f


def _attn_footprint(cp, lp, tq, tk, resident, x_bytes):
    f = 2 * cp * tq * x_bytes                 # x residual blocks
    f += 2 * tq * cp * 2                      # Q blocks (bf16)
    kv_elems = cp * (lp if resident else tk)  # per K / per V block
    f += 2 * 2 * kv_elems * 2                 # K and V blocks (bf16, dbuf)
    f += 2 * tk * 4                           # key-bias blocks
    f += 2 * cp * tq * x_bytes                # output blocks
    f += tq * cp * 4 + 2 * tq * 4             # acc / m / l scratch
    f += 4 * tq * tk * 4                      # score / prob / exp temporaries
    f += 2 * tq * cp * 4                      # context + transpose temporaries
    return f


# ---------------------------------------------------------------------------
# Pass 1: fused QKV projection (three 1x1 convs as a single (3C, C) matmul).
# ---------------------------------------------------------------------------
def _make_proj_kernel(cp):
    def kernel(x_ref, w_ref, b_ref, oq_ref, okv_ref):
        x_bf = x_ref[0].astype(jnp.bfloat16)                        # (cp, tl)
        y = jnp.dot(w_ref[...], x_bf,
                    preferred_element_type=jnp.float32)             # (3cp, tl)
        y = y + b_ref[...]                                          # bias (3cp, 1)
        # Q goes out token-major so the attention pass needs no per-step
        # transposes; cast to bf16 BEFORE the transpose so the XLU moves half
        # as many vregs.  K/V stay channel-major (lane-dense stores).
        oq_ref[0] = y[:cp].astype(jnp.bfloat16).T                   # (tl, cp)
        okv_ref[0] = y[cp:].astype(okv_ref.dtype)                   # (2cp, tl)
    return kernel


# ---------------------------------------------------------------------------
# Pass 2: flash-style attention + residual, channel-major output.
# ---------------------------------------------------------------------------
def _make_attn_kernel(tk, kv_resident, mask_needed):
    def kernel(x_ref, q_ref, k_ref, v_ref, kb_ref, o_ref, m_ref, l_ref, acc_ref):
        kv = pl.program_id(2)

        @pl.when(kv == 0)
        def _init():
            m_ref[...] = jnp.full_like(m_ref, _NEG_INF)
            l_ref[...] = jnp.zeros_like(l_ref)
            acc_ref[...] = jnp.zeros_like(acc_ref)

        q = q_ref[0]                                    # (tq, cp) bf16
        if kv_resident:
            # K/V slab is VMEM-resident for the whole batch element; slice the
            # current kv tile out of it (lane-aligned dynamic slice).
            start = pl.multiple_of(kv * tk, tk)
            k = k_ref[0, :, pl.ds(start, tk)]           # (cp, tk) bf16
            v = v_ref[0, :, pl.ds(start, tk)]           # (cp, tk) bf16
        else:
            k = k_ref[0]                                # (cp, tk) bf16
            v = v_ref[0]                                # (cp, tk) bf16

        # scores: (tq, cp) @ (cp, tk) -> (tq, tk); bf16 in, f32 accumulate
        s = jnp.dot(q, k, preferred_element_type=jnp.float32)
        if mask_needed:  # static: only traced when L was padded up to 128x
            s = s + kb_ref[...]                         # (1, tk) additive bias

        m_prev = m_ref[...]                             # (tq, 1)
        m_new = jnp.maximum(m_prev, jnp.max(s, axis=1, keepdims=True))
        alpha = jnp.exp(m_prev - m_new)                 # (tq, 1)
        p = jnp.exp(s - m_new)                          # (tq, tk) f32

        l_ref[...] = alpha * l_ref[...] + jnp.sum(p, axis=1, keepdims=True)
        # context partial: contract kv axis of p with kv axis of v
        # (transposed-rhs MXU contraction, no explicit transpose)
        acc_ref[...] = alpha * acc_ref[...] + lax.dot_general(
            p.astype(jnp.bfloat16), v, (((1,), (1,)), ((), ())),
            preferred_element_type=jnp.float32)         # (tq, cp)
        m_ref[...] = m_new

        @pl.when(kv == pl.num_programs(2) - 1)
        def _finalize():
            inv_l = pl.reciprocal(l_ref[...], approx=True)        # (tq, 1)
            ctx = acc_ref[...] * inv_l                            # (tq, cp)
            # single f32 transpose per query tile (amortized over all kv steps)
            o_ref[0] = (x_ref[0] + ctx.T).astype(o_ref.dtype)     # (cp, tq)
    return kernel


def rcca_forward(x, wq, bq, wk, bk, wv, bv):
    """x: (B, C, L); W*: (C, C); b*: (C,).  Matches RCCA.forward."""
    B, C, L = x.shape
    xb = int(jnp.dtype(x.dtype).itemsize)
    cp = max(128, _round_up(C, 16))   # lane-dense channel count
    lp = _round_up(L, 128)            # lane-dense sequence length

    budget = _vmem_budget()

    # ---------------- tile selection (sized against the VMEM budget) --------
    tl_cands = _divisor_tiles(lp, (lp, 1024, 512, 256, 128))
    tl = max([t for t in tl_cands if _proj_footprint(cp, t, xb) <= budget],
             default=128)

    tq_cands = _divisor_tiles(lp, (512, 256, 128))
    # keep at least 2 units of "parallel" work so v7x's two TensorCores are fed
    pref = [t for t in tq_cands if B * (lp // t) >= 2] or tq_cands
    tq = max([t for t in pref
              if _attn_footprint(cp, lp, t, 128, False, xb) <= budget],
             default=min(pref))

    # resident K/V across all q tiles whenever it fits (removes the dominant
    # HBM re-streaming); otherwise keep streaming kv tiles (v7x-friendly).
    resident = _attn_footprint(cp, lp, tq, 128, True, xb) <= budget
    tk_cands = _divisor_tiles(lp, (lp, 2048, 1024, 512, 256, 128))
    tk = max([t for t in tk_cands
              if _attn_footprint(cp, lp, tq, t, resident, xb) <= budget],
             default=128)

    scale = 1.0 / (C ** 0.5)          # fold softmax scale into the Q projection

    def pad_w(w):
        return jnp.pad(w, ((0, cp - C), (0, cp - C)))

    def pad_b(b):
        return jnp.pad(b, (0, cp - C))

    w_qkv = jnp.concatenate([pad_w(wq * scale), pad_w(wk), pad_w(wv)],
                            axis=0).astype(jnp.bfloat16)             # (3cp, cp)
    b_qkv = jnp.concatenate([pad_b(bq * scale), pad_b(bk), pad_b(bv)],
                            axis=0).reshape(3 * cp, 1).astype(jnp.float32)
    x_pad = jnp.pad(x, ((0, 0), (0, cp - C), (0, lp - L)))            # (B, cp, lp)

    mask_needed = lp != L
    # additive score bias: 0 on real key columns, -1e30 on padded ones
    key_bias = jnp.where(jnp.arange(lp)[None, :] < L, 0.0,
                         _NEG_INF).astype(jnp.float32)                # (1, lp)

    # ---------------- pass 1: fused QKV projection ----------------
    proj_cost = pl.CostEstimate(
        flops=int(2 * B * lp * 3 * cp * cp),
        transcendentals=0,
        bytes_accessed=int(B * cp * lp * xb + 3 * cp * cp * 2
                           + B * lp * cp * 2 + B * 2 * cp * lp * 2))
    q_lc, kv_cl = pl.pallas_call(
        _make_proj_kernel(cp),
        out_shape=(jax.ShapeDtypeStruct((B, lp, cp), jnp.bfloat16),
                   jax.ShapeDtypeStruct((B, 2 * cp, lp), jnp.bfloat16)),
        grid_spec=pltpu.PrefetchScalarGridSpec(
            num_scalar_prefetch=0,
            grid=(B, lp // tl),
            in_specs=[
                pl.BlockSpec((1, cp, tl), lambda b, j: (b, 0, j)),    # x
                pl.BlockSpec((3 * cp, cp), lambda b, j: (0, 0)),      # W_qkv
                pl.BlockSpec((3 * cp, 1), lambda b, j: (0, 0)),       # b_qkv
            ],
            out_specs=(
                pl.BlockSpec((1, tl, cp), lambda b, j: (b, j, 0)),      # Q (L, C)
                pl.BlockSpec((1, 2 * cp, tl), lambda b, j: (b, 0, j)),  # K;V (C, L)
            ),
        ),
        compiler_params=pltpu.CompilerParams(
            dimension_semantics=("parallel", "parallel"),
            vmem_limit_bytes=_vmem_limit(_proj_footprint(cp, tl, xb), budget),
        ),
        cost_estimate=proj_cost,
    )(x_pad, w_qkv, b_qkv)

    # ---------------- pass 2: flash attention + residual ----------------
    if resident:
        k_spec = pl.BlockSpec((1, cp, lp), lambda b, qi, kv: (b, 0, 0))
        v_spec = pl.BlockSpec((1, cp, lp), lambda b, qi, kv: (b, 1, 0))
        kv_bytes = B * 2 * cp * lp * 2
    else:
        k_spec = pl.BlockSpec((1, cp, tk), lambda b, qi, kv: (b, 0, kv))
        v_spec = pl.BlockSpec((1, cp, tk), lambda b, qi, kv: (b, 1, kv))
        kv_bytes = B * (lp // tq) * 2 * cp * lp * 2   # re-streamed per q tile

    attn_cost = pl.CostEstimate(
        flops=int(4 * B * lp * lp * cp),
        transcendentals=int(B * lp * lp),
        bytes_accessed=int(2 * B * cp * lp * xb + B * lp * cp * 2 + kv_bytes))

    out_pad = pl.pallas_call(
        _make_attn_kernel(tk, resident, mask_needed),
        out_shape=jax.ShapeDtypeStruct((B, cp, lp), x.dtype),
        grid_spec=pltpu.PrefetchScalarGridSpec(
            num_scalar_prefetch=0,
            grid=(B, lp // tq, lp // tk),
            in_specs=[
                pl.BlockSpec((1, cp, tq), lambda b, qi, kv: (b, 0, qi)),  # x
                pl.BlockSpec((1, tq, cp), lambda b, qi, kv: (b, qi, 0)),  # Q
                k_spec,                                                   # K
                v_spec,                                                   # V
                pl.BlockSpec((1, tk), lambda b, qi, kv: (0, kv)),         # key bias
            ],
            out_specs=pl.BlockSpec((1, cp, tq), lambda b, qi, kv: (b, 0, qi)),
            scratch_shapes=[
                pltpu.VMEM((tq, 1), jnp.float32),    # running max
                pltpu.VMEM((tq, 1), jnp.float32),    # running denominator
                pltpu.VMEM((tq, cp), jnp.float32),   # context accumulator
            ],
        ),
        compiler_params=pltpu.CompilerParams(
            dimension_semantics=("parallel", "parallel", "arbitrary"),
            vmem_limit_bytes=_vmem_limit(
                _attn_footprint(cp, lp, tq, tk, resident, xb), budget),
        ),
        cost_estimate=attn_cost,
    )(x_pad, q_lc, kv_cl, kv_cl, key_bias)

    return out_pad[:, :C, :L]


def _reference(x, wq, bq, wk, bk, wv, bv):
    """Pure-JAX reference mirroring the PyTorch forward."""
    C = x.shape[1]

    def conv1x1(xx, w, b):
        return jnp.einsum("bcl,oc->bol", xx, w) + b[None, :, None]

    Q = jnp.transpose(conv1x1(x, wq, bq), (0, 2, 1))   # (B, L, C)
    K = conv1x1(x, wk, bk)                             # (B, C, L)
    attn = jax.nn.softmax(jnp.einsum("blc,bcm->blm", Q, K) / (C ** 0.5), axis=-1)
    V = jnp.transpose(conv1x1(x, wv, bv), (0, 2, 1))   # (B, L, C)
    context = jnp.einsum("blm,bmc->blc", attn, V)      # (B, L, C)
    return x + jnp.transpose(context, (0, 2, 1))


def _make_inputs(key, B, C, L):
    ks = jax.random.split(key, 7)
    x = jax.random.normal(ks[0], (B, C, L), dtype=jnp.float32)
    wq = jax.random.normal(ks[1], (C, C), dtype=jnp.float32) * 0.1
    bq = jax.random.normal(ks[2], (C,), dtype=jnp.float32) * 0.1
    wk = jax.random.normal(ks[3], (C, C), dtype=jnp.float32) * 0.1
    bk = jax.random.normal(ks[4], (C,), dtype=jnp.float32) * 0.1
    wv = jax.random.normal(ks[5], (C, C), dtype=jnp.float32) * 0.1
    bv = jax.random.normal(ks[6], (C,), dtype=jnp.float32) * 0.1
    return x, wq, bq, wk, bk, wv, bv


if __name__ == "__main__":
    key = jax.random.PRNGKey(0)
    k1, k2 = jax.random.split(key)

    # primary small demo shape (Conv1d NCL: batch=2, channels=4, length=16)
    args = _make_inputs(k1, 2, 4, 16)
    out = jax.block_until_ready(rcca_forward(*args))
    ref = _reference(*args)
    assert out.shape == ref.shape
    assert jnp.allclose(out, ref, atol=2e-2, rtol=2e-2), "mismatch (B=2,C=4,L=16)"

    # second shape exercising padded key columns + the padding-bias path
    args2 = _make_inputs(k2, 1, 12, 300)
    out2 = jax.block_until_ready(rcca_forward(*args2))
    ref2 = _reference(*args2)
    assert jnp.allclose(out2, ref2, atol=2e-2, rtol=2e-2), "mismatch (B=1,C=12,L=300)"

    print("KERNEL_OK")
</pallas_src>

<mosaic_0001>
module attributes {stable_mosaic.version = 11 : i64} {
  func.func @kernel(%arg0: i32, %arg1: i32, %arg2: memref<1x128x128xf32, #tpu.memory_space<vmem>>, %arg3: memref<384x128xbf16, #tpu.memory_space<vmem>>, %arg4: memref<384x1xf32, #tpu.memory_space<vmem>>, %arg5: memref<1x128x128xbf16, #tpu.memory_space<vmem>>, %arg6: memref<1x256x128xbf16, #tpu.memory_space<vmem>>) attributes {dimension_semantics = [#tpu.dimension_semantics<parallel>, #tpu.dimension_semantics<parallel>], iteration_bounds = array<i64: 2, 1>, scalar_prefetch = 0 : i64, scratch_operands = 0 : i64, tpu.core_type = #tpu.core_type<tc>, window_params = [{transform_indices = @transform_0, window_bounds = array<i64: 1, 128, 128>}, {pipeline_mode = #tpu.pipeline_mode<synchronous>, transform_indices = @transform_1, window_bounds = array<i64: 384, 128>}, {pipeline_mode = #tpu.pipeline_mode<synchronous>, transform_indices = @transform_2, window_bounds = array<i64: 384, 1>}, {transform_indices = @transform_3, window_bounds = array<i64: 1, 128, 128>}, {transform_indices = @transform_4, window_bounds = array<i64: 1, 256, 128>}]} {
    %c0 = arith.constant 0 : index
    %c0_0 = arith.constant 0 : index
    %c0_1 = arith.constant 0 : index
    %0 = vector.load %arg2[%c0, %c0_0, %c0_1] : memref<1x128x128xf32, #tpu.memory_space<vmem>>, vector<1x128x128xf32>
    %1 = vector.shape_cast %0 : vector<1x128x128xf32> to vector<128x128xf32>
    %2 = arith.truncf %1 : vector<128x128xf32> to vector<128x128xbf16>
    %c0_2 = arith.constant 0 : index
    %c0_3 = arith.constant 0 : index
    %3 = vector.load %arg3[%c0_2, %c0_3] : memref<384x128xbf16, #tpu.memory_space<vmem>>, vector<384x128xbf16>
    %cst = arith.constant dense<0.000000e+00> : vector<384x128xf32>
    %4 = tpu.matmul %3, %2, %cst {dimension_numbers = #tpu.dot_dimension_numbers<[1], [0], [0], [1], [0, 0, 1, 1], [], []>} : vector<384x128xbf16>, vector<128x128xbf16>, vector<384x128xf32> -> vector<384x128xf32>
    %c0_4 = arith.constant 0 : index
    %c0_5 = arith.constant 0 : index
    %5 = vector.load %arg4[%c0_4, %c0_5] : memref<384x1xf32, #tpu.memory_space<vmem>>, vector<384x1xf32>
    %6 = vector.broadcast %5 : vector<384x1xf32> to vector<384x128xf32>
    %7 = arith.addf %4, %6 : vector<384x128xf32>
    %8 = vector.extract_strided_slice %7 {offsets = [0, 0], sizes = [128, 128], strides = [1, 1]} : vector<384x128xf32> to vector<128x128xf32>
    %9 = arith.truncf %8 : vector<128x128xf32> to vector<128x128xbf16>
    %10 = tpu.transpose %9, [1, 0] : vector<128x128xbf16> -> vector<128x128xbf16>
    %c0_6 = arith.constant 0 : index
    %c0_7 = arith.constant 0 : index
    %c0_8 = arith.constant 0 : index
    %11 = vector.load %arg5[%c0_6, %c0_7, %c0_8] : memref<1x128x128xbf16, #tpu.memory_space<vmem>>, vector<1x128x128xbf16>
    %12 = vector.shape_cast %11 : vector<1x128x128xbf16> to vector<128x128xbf16>
    %13 = vector.shape_cast %10 : vector<128x128xbf16> to vector<1x128x128xbf16>
    tpu.vector_store %arg5[%c0_6, %c0_7, %c0_8], %13 {strides = array<i32>} : memref<1x128x128xbf16, #tpu.memory_space<vmem>>, vector<1x128x128xbf16>,
    %14 = vector.extract_strided_slice %7 {offsets = [128, 0], sizes = [256, 128], strides = [1, 1]} : vector<384x128xf32> to vector<256x128xf32>
    %15 = arith.truncf %14 : vector<256x128xf32> to vector<256x128xbf16>
    %c0_9 = arith.constant 0 : index
    %c0_10 = arith.constant 0 : index
    %c0_11 = arith.constant 0 : index
    %16 = vector.load %arg6[%c0_9, %c0_10, %c0_11] : memref<1x256x128xbf16, #tpu.memory_space<vmem>>, vector<1x256x128xbf16>
    %17 = vector.shape_cast %16 : vector<1x256x128xbf16> to vector<256x128xbf16>
    %18 = vector.shape_cast %15 : vector<256x128xbf16> to vector<1x256x128xbf16>
    tpu.vector_store %arg6[%c0_9, %c0_10, %c0_11], %18 {strides = array<i32>} : memref<1x256x128xbf16, #tpu.memory_space<vmem>>, vector<1x256x128xbf16>,
    return
  }
  func.func @transform_0(%arg0: i32, %arg1: i32) -> (i32, i32, i32) {
    %c0_i32 = arith.constant 0 : i32
    %c0_i32_0 = arith.constant 0 : i32
    return %arg0, %c0_i32, %arg1 : i32, i32, i32
  }
  func.func @transform_1(%arg0: i32, %arg1: i32) -> (i32, i32) {
    %c0_i32 = arith.constant 0 : i32
    %c0_i32_0 = arith.constant 0 : i32
    %c0_i32_1 = arith.constant 0 : i32
    return %c0_i32, %c0_i32_0 : i32, i32
  }
  func.func @transform_2(%arg0: i32, %arg1: i32) -> (i32, i32) {
    %c0_i32 = arith.constant 0 : i32
    %c0_i32_0 = arith.constant 0 : i32
    %c0_i32_1 = arith.constant 0 : i32
    return %c0_i32, %c0_i32_0 : i32, i32
  }
  func.func @transform_3(%arg0: i32, %arg1: i32) -> (i32, i32, i32) {
    %c0_i32 = arith.constant 0 : i32
    %c0_i32_0 = arith.constant 0 : i32
    return %arg0, %arg1, %c0_i32 : i32, i32, i32
  }
  func.func @transform_4(%arg0: i32, %arg1: i32) -> (i32, i32, i32) {
    %c0_i32 = arith.constant 0 : i32
    %c0_i32_0 = arith.constant 0 : i32
    return %arg0, %c0_i32, %arg1 : i32, i32, i32
  }
}

</mosaic_0001>

<llo_original>
// kernel: tpu_custom_call.1
$region0: #{tpu_custom_call.1}
  #allocation0 [shape = 'u32[]', space=smem, size = 0x4, offset = 0x4, fixed_abs, tag = 'smem constant byte address 0x4 - core index']
  #allocation1 [shape = 'u32[144,128]{1,0:T(1,128)}', space=vmem, size = 0x12000, scoped, tag = 'internal scratch']
  %s0 = inlined_call_operand.vmem [shape: f32[2,128,128], index: 0, kind: input, shape index: {}]
  %s1 = inlined_call_operand.hbm [shape: bf16[384,128], index: 1, kind: input, shape index: {}]
  %s2 = inlined_call_operand.vmem [shape: f32[384,1], index: 2, kind: input, shape index: {}]
  %s3 = inlined_call_operand.hbm [shape: bf16[2,128,128], index: 3, kind: output, shape index: {0}]
  %s4 = inlined_call_operand.hbm [shape: bf16[2,256,128], index: 4, kind: output, shape index: {1}]
  %5 = xla_tuple %s3, %s4
  %s6 = sld [smem:[#allocation0]]
  $region57: #{tpu_custom_call.1} parent=0
    _
  %s8 = ssub.s32 1, %s6
  %s9 = scalar_select 0, %s8, %s6
  $region1: #{tpu_custom_call.1} parent=0
    #allocation2 [shape = 'u8[98304]{0}', space=vmem, size = 0x18000, scoped, tag = 'input window, operand 1, single buffered']
    #allocation3 [shape = 's32[2]{0}', space=sflag, size = 0x8, scoped, tag = 'scoped memory for tpu_custom_call.1']
    #allocation4 [shape = 's32[2]{0}', space=sflag, size = 0x8, scoped, tag = 'scoped memory for tpu_custom_call.1']
    #allocation5 [shape = 'u8[65536]{0}', space=vmem, size = 0x10000, scoped, tag = 'output window, operand 0']
    #allocation6 [shape = 'u8[131072]{0}', space=vmem, size = 0x20000, scoped, tag = 'output window, operand 1']
    #allocation7 [shape = 's32[2]{0}', space=sflag, size = 0x8, scoped, tag = 'scoped memory for tpu_custom_call.1']
    %10 = vsyncpa [#allocation3], 0
    %11 = vsyncpa [#allocation4], 0
    %s12 = scalar_lea.sflag [#allocation4], 1
    %13 = vsyncpa %s12, 0
    %14 = vsyncpa [#allocation7], 0
    %s15 = scalar_lea.sflag [#allocation7], 1
    %16 = vsyncpa %s15, 0
    loop: start=0, step=1, limit=4
    $region2: #{tpu_custom_call.1} parent=1 // loop_pre_header
      _
    $region3: #{tpu_custom_call.1} parent=1 // loop_header
      %s18 = sphi 0, %s22
      %p19 = scmp.ge.s32.totalorder %s18, 4
      %s25 = sphi 0, %s37
      %s26 = sphi 0, %s33
      %s27 = sphi 0, %s25
      %s28 = sphi 0, %s26
      %s29 = sphi 0, %s27
      %s30 = sphi 0, %s28
      %s42 = sphi 0, %s44
      %s45 = sphi 0, %s42
      %s46 = sphi 0, %s45
      %s62 = sphi 0, %s46
      %s66 = sphi 0, %s66
      %s68 = sphi 0, %s66
      %s69 = sphi 0, %s68
      %s83 = sphi 0, %s69
      %s87 = sphi 0, %s87
      %s89 = sphi 0, %s87
      %s90 = sphi 0, %s89
      %s104 = sphi 0, %s90
      %s112 = sphi 0, %s114
      %s115 = sphi 0, %s112
      %s116 = sphi 0, %s115
      %s132 = sphi 0, %s116
      %s140 = sphi 0, %s142
      %s143 = sphi 0, %s140
      %s144 = sphi 0, %s143
      %s160 = sphi 0, %s144
    $region4: #{tpu_custom_call.1} parent=1 // loop_header_branch
      %21 = sbr.rel (%p19) target = $region8
    $region5: #{tpu_custom_call.1} parent=1 // loop_body
      %s23 = ssub.s32 %s18, 1
      %s24 = ssub.s32 %s18, 2
      %s31 = sadd.s32 1, %s26
      %p32 = scmp.ge.s32.totalorder %s31, 1
      %s33 = scalar_select %p32, 0, %s31
      %s34 = sadd.s32 1, %s25
      %s35 = scalar_select %p32, %s34, %s25
      %p36 = scmp.ge.s32.totalorder %s35, 2
      %s37 = scalar_select %p36, 0, %s35
      %s38 = ssub.s32 %s25, %s37
      %s39 = ssub.s32 %s26, %s33
      %s40 = sor.u32 %s38, %s39
      %p41 = scmp.eq.s32.totalorder %s40, 0
      %s43 = sadd.s32 %s42, 1
      %s44 = scalar_select %p41, %s42, %s43
      %p47 = pneg %p41
      %p48 = scmp.eq.s32.totalorder %s18, 1
      %p49 = por %p47, %p48
      %p50 = scmp.ne.s32.totalorder %s42, %s45
      %p51 = scmp.eq.s32.totalorder %s18, 0
      %p52 = por %p50, %p51
      %p53 = scmp.ne.s32.totalorder %s42, %s45
      %p54 = scmp.eq.s32.totalorder %s23, 1
      %p55 = por %p53, %p54
      %p56 = scmp.ne.s32.totalorder %s45, %s46
      %p57 = scmp.eq.s32.totalorder %s23, 0
      %p58 = por %p56, %p57
      %p59 = scmp.ne.s32.totalorder %s45, %s46
      %p60 = scmp.eq.s32.totalorder %s24, 1
      %p61 = por %p59, %p60
      %p63 = scmp.ne.s32.totalorder %s46, %s62
      %p64 = scmp.eq.s32.totalorder %s24, 0
      %p65 = por %p63, %p64
      %s67 = sadd.s32 %s66, 1
      %p70 = scmp.eq.s32.totalorder %s18, 1
      %p71 = scmp.ne.s32.totalorder %s66, %s68
      %p72 = scmp.eq.s32.totalorder %s18, 0
      %p73 = por %p71, %p72
      %p74 = scmp.ne.s32.totalorder %s66, %s68
      %p75 = scmp.eq.s32.totalorder %s23, 1
      %p76 = por %p74, %p75
      %p77 = scmp.ne.s32.totalorder %s68, %s69
      %p78 = scmp.eq.s32.totalorder %s23, 0
      %p79 = por %p77, %p78
      %p80 = scmp.ne.s32.totalorder %s68, %s69
      %p81 = scmp.eq.s32.totalorder %s24, 1
      %p82 = por %p80, %p81
      %p84 = scmp.ne.s32.totalorder %s69, %s83
      %p85 = scmp.eq.s32.totalorder %s24, 0
      %p86 = por %p84, %p85
      %s88 = sadd.s32 %s87, 1
      %p91 = scmp.eq.s32.totalorder %s18, 1
      %p92 = scmp.ne.s32.totalorder %s87, %s89
      %p93 = scmp.eq.s32.totalorder %s18, 0
      %p94 = por %p92, %p93
      %p95 = scmp.ne.s32.totalorder %s87, %s89
      %p96 = scmp.eq.s32.totalorder %s23, 1
      %p97 = por %p95, %p96
      %p98 = scmp.ne.s32.totalorder %s89, %s90
      %p99 = scmp.eq.s32.totalorder %s23, 0
      %p100 = por %p98, %p99
      %p101 = scmp.ne.s32.totalorder %s89, %s90
      %p102 = scmp.eq.s32.totalorder %s24, 1
      %p103 = por %p101, %p102
      %p105 = scmp.ne.s32.totalorder %s90, %s104
      %p106 = scmp.eq.s32.totalorder %s24, 0
      %p107 = por %p105, %p106
      %s108 = ssub.s32 %s25, %s37
      %s109 = ssub.s32 %s26, %s33
      %s110 = sor.u32 %s108, %s109
      %p111 = scmp.eq.s32.totalorder %s110, 0
      %s113 = sadd.s32 %s112, 1
      %s114 = scalar_select %p111, %s112, %s113
      %p117 = pneg %p111
      %p118 = scmp.eq.s32.totalorder %s18, 1
      %p119 = por %p117, %p118
      %p120 = scmp.ne.s32.totalorder %s112, %s115
      %p121 = scmp.eq.s32.totalorder %s18, 0
      %p122 = por %p120, %p121
      %p123 = scmp.ne.s32.totalorder %s112, %s115
      %p124 = scmp.eq.s32.totalorder %s23, 1
      %p125 = por %p123, %p124
      %p126 = scmp.ne.s32.totalorder %s115, %s116
      %p127 = scmp.eq.s32.totalorder %s23, 0
      %p128 = por %p126, %p127
      %p129 = scmp.ne.s32.totalorder %s115, %s116
      %p130 = scmp.eq.s32.totalorder %s24, 1
      %p131 = por %p129, %p130
      %p133 = scmp.ne.s32.totalorder %s116, %s132
      %p134 = scmp.eq.s32.totalorder %s24, 0
      %p135 = por %p133, %p134
      %s136 = ssub.s32 %s25, %s37
      %s137 = ssub.s32 %s26, %s33
      %s138 = sor.u32 %s136, %s137
      %p139 = scmp.eq.s32.totalorder %s138, 0
      %s141 = sadd.s32 %s140, 1
      %s142 = scalar_select %p139, %s140, %s141
      %p145 = pneg %p139
      %p146 = scmp.eq.s32.totalorder %s18, 1
      %p147 = por %p145, %p146
      %p148 = scmp.ne.s32.totalorder %s140, %s143
      %p149 = scmp.eq.s32.totalorder %s18, 0
      %p150 = por %p148, %p149
      %p151 = scmp.ne.s32.totalorder %s140, %s143
      %p152 = scmp.eq.s32.totalorder %s23, 1
      %p153 = por %p151, %p152
      %p154 = scmp.ne.s32.totalorder %s143, %s144
      %p155 = scmp.eq.s32.totalorder %s23, 0
      %p156 = por %p154, %p155
      %p157 = scmp.ne.s32.totalorder %s143, %s144
      %p158 = scmp.eq.s32.totalorder %s24, 1
      %p159 = por %p157, %p158
      %p161 = scmp.ne.s32.totalorder %s144, %s160
      %p162 = scmp.eq.s32.totalorder %s24, 0
      %p163 = por %p161, %p162
      %p164 = scmp.le.s32.totalorder 1, %s18
      %p165 = scmp.lt.s32.totalorder %s18, 3
      %p166 = pnand %p164, %p165
      %p167 = pneg %p166
      // Predicated region
      $region9: #{tpu_custom_call.1} parent=5 // pred_check
        _
      $region10: #{tpu_custom_call.1} parent=5 // pred_check_branch
        %169 = sbr.rel (%p166) target = $region12
      $region11: #{tpu_custom_call.1} parent=5 // pred_region
        %s170 = ssub.s32 %s18, 1
        // Predicated region
        $region13: #{tpu_custom_call.1} parent=11 // pred_check
          %p171 = pneg %p79
        $region14: #{tpu_custom_call.1} parent=11 // pred_check_branch
          %173 = sbr.rel (%p171) target = $region16
        $region15: #{tpu_custom_call.1} parent=11 // pred_region
          %s175 = ssub.s32 3072, 3072
          %176 = vsyncadd [#allocation3], %s175
          %s177 = sshll.u32 [#allocation2], 4
          %s178 = int_to_ptr.vmem [resolvable:$true] %s177
          %183 = dma.hbm_to_vmem [thread:$0]  %s1, 3072, %s178, [#allocation3], 64, 64, 4
        $region16: #{tpu_custom_call.1} parent=11 // pred_fallthru
          _
        // Predicated region
        $region17: #{tpu_custom_call.1} parent=11 // pred_check
          %p184 = pneg %p100
        $region18: #{tpu_custom_call.1} parent=11 // pred_check_branch
          %186 = sbr.rel (%p184) target = $region20
        $region19: #{tpu_custom_call.1} parent=11 // pred_region
          _
        $region20: #{tpu_custom_call.1} parent=11 // pred_fallthru
          _
      $region12: #{tpu_custom_call.1} parent=5 // pred_fallthru
        _
      %p187 = scmp.lt.s32.totalorder %s18, 2
      // Predicated region
      $region21: #{tpu_custom_call.1} parent=5 // pred_check
        %p188 = pneg %p187
      $region22: #{tpu_custom_call.1} parent=5 // pred_check_branch
        %190 = sbr.rel (%p188) target = $region24
      $region23: #{tpu_custom_call.1} parent=5 // pred_region
        // Predicated region
        $region25: #{tpu_custom_call.1} parent=23 // pred_check
          %p191 = pneg %p52
        $region26: #{tpu_custom_call.1} parent=23 // pred_check_branch
          %193 = sbr.rel (%p191) target = $region28
        $region27: #{tpu_custom_call.1} parent=23 // pred_region
          %p194 = scmp.lt.s32.totalorder %s25, 1
          %s195 = scalar_select %p194, %s25, 1
          %p196 = scmp.lt.s32.totalorder %s26, 0
          %s197 = scalar_select %p196, %s26, 0
          %s198 = smul.addr %s195, 16
          %s199 = sadd.s32 %s197, %s198
          %s200 = smul.addr %s199, 8
          %s201 = scalar_lea.vmem %s0, %s200
        $region28: #{tpu_custom_call.1} parent=23 // pred_fallthru
          _
      $region24: #{tpu_custom_call.1} parent=5 // pred_fallthru
        _
      %p202 = scmp.le.s32.totalorder 1, %s18
      %p203 = scmp.lt.s32.totalorder %s18, 3
      %p204 = pnand %p202, %p203
      %p205 = pneg %p204
      // Predicated region
      $region29: #{tpu_custom_call.1} parent=5 // pred_check
        _
      $region30: #{tpu_custom_call.1} parent=5 // pred_check_branch
        %207 = sbr.rel (%p204) target = $region32
      $region31: #{tpu_custom_call.1} parent=5 // pred_region
        %s208 = ssub.s32 %s18, 1
        // Predicated region
        $region33: #{tpu_custom_call.1} parent=31 // pred_check
          %p209 = pneg %p79
        $region34: #{tpu_custom_call.1} parent=31 // pred_check_branch
          %211 = sbr.rel (%p209) target = $region36
        $region35: #{tpu_custom_call.1} parent=31 // pred_region
          %212 = dma.done [#allocation3], 3072
        $region36: #{tpu_custom_call.1} parent=31 // pred_fallthru
          _
        %p213 = scmp.lt.s32.totalorder %s27, 1
        %s214 = scalar_select %p213, %s27, 1
        %p215 = scmp.lt.s32.totalorder %s28, 0
        %s216 = scalar_select %p215, %s28, 0
        %s217 = smul.addr %s214, 16
        %s218 = sadd.s32 %s216, %s217
        %s219 = smul.addr %s218, 8
        %s220 = scalar_lea.vmem %s0, %s219
        %p221 = pneg %p58
        %p222 = pneg %p55
        %p223 = pneg %p79
        %p224 = pneg %p76
        %p225 = pneg %p100
        %p226 = pneg %p97
        %p227 = pneg %p128
        %p228 = pneg %p125
        %s229 = sand.u32 %s115, 1
        %s230 = scalar_lea.sflag [#allocation4], %s229
        %s231 = sand.u32 %s115, 1
        %s232 = smul.addr %s231, 64
        %s233 = scalar_lea.vmem [#allocation5], %s232
        %p234 = pneg %p156
        %p235 = pneg %p153
        %s236 = sand.u32 %s143, 1
        %s237 = scalar_lea.sflag [#allocation7], %s236
        %s238 = sand.u32 %s143, 1
        %s239 = smul.addr %s238, 128
        %s240 = scalar_lea.vmem [#allocation6], %s239
        %p241 = scmp.lt.s32.totalorder %s27, 1
        %s242 = scalar_select %p241, %s27, 1
        %p243 = scmp.lt.s32.totalorder %s28, 0
        %s244 = scalar_select %p243, %s28, 0
        %s245 = smul.addr %s242, 16
        %s246 = sadd.s32 %s244, %s245
        %s247 = smul.addr %s246, 8
        %s248 = scalar_lea.vmem %s0, %s247
        %s249 = smul.u32 16, %s28
        %v251 = vld [vmem:[%s248] sm:$0xff]
        %v252 = vld [vmem:[%s248 + $0x8] sm:$0xff]
        %v253 = vld [vmem:[%s248 + $0x10] sm:$0xff]
        %v254 = vld [vmem:[%s248 + $0x18] sm:$0xff]
        %v255 = vld [vmem:[%s248 + $0x20] sm:$0xff]
        %v256 = vld [vmem:[%s248 + $0x28] sm:$0xff]
        %v257 = vld [vmem:[%s248 + $0x30] sm:$0xff]
        %v258 = vld [vmem:[%s248 + $0x38] sm:$0xff]
        %v259 = vld [vmem:[%s248 + $0x40] sm:$0xff]
        %v260 = vld [vmem:[%s248 + $0x48] sm:$0xff]
        %v261 = vld [vmem:[%s248 + $0x50] sm:$0xff]
        %v262 = vld [vmem:[%s248 + $0x58] sm:$0xff]
        %v263 = vld [vmem:[%s248 + $0x60] sm:$0xff]
        %v264 = vld [vmem:[%s248 + $0x68] sm:$0xff]
        %v265 = vld [vmem:[%s248 + $0x70] sm:$0xff]
        %v266 = vld [vmem:[%s248 + $0x78] sm:$0xff]
        %v267 = vpack.c.bf16 %v252, %v251
        %v268 = vpack.c.bf16 %v254, %v253
        %v269 = vpack.c.bf16 %v256, %v255
        %v270 = vpack.c.bf16 %v258, %v257
        %v271 = vpack.c.bf16 %v260, %v259
        %v272 = vpack.c.bf16 %v262, %v261
        %v273 = vpack.c.bf16 %v264, %v263
        %v274 = vpack.c.bf16 %v266, %v265
        %v275 = vld [vmem:[#allocation2] sm:$0xf]
        %v276 = vld [vmem:[#allocation2 + $0x4] sm:$0xf]
        %v277 = vld [vmem:[#allocation2 + $0x8] sm:$0xf]
        %v278 = vld [vmem:[#allocation2 + $0xc] sm:$0xf]
        %v279 = vld [vmem:[#allocation2 + $0x10] sm:$0xf]
        %v280 = vld [vmem:[#allocation2 + $0x14] sm:$0xf]
        %v281 = vld [vmem:[#allocation2 + $0x18] sm:$0xf]
        %v282 = vld [vmem:[#allocation2 + $0x1c] sm:$0xf]
        %v283 = vld [vmem:[#allocation2 + $0x20] sm:$0xf]
        %v284 = vld [vmem:[#allocation2 + $0x24] sm:$0xf]
        %v285 = vld [vmem:[#allocation2 + $0x28] sm:$0xf]
        %v286 = vld [vmem:[#allocation2 + $0x2c] sm:$0xf]
        %v287 = vld [vmem:[#allocation2 + $0x30] sm:$0xf]
        %v288 = vld [vmem:[#allocation2 + $0x34] sm:$0xf]
        %v289 = vld [vmem:[#allocation2 + $0x38] sm:$0xf]
        %v290 = vld [vmem:[#allocation2 + $0x3c] sm:$0xf]
        %v291 = vld [vmem:[#allocation2 + $0x40] sm:$0xf]
        %v292 = vld [vmem:[#allocation2 + $0x44] sm:$0xf]
        %v293 = vld [vmem:[#allocation2 + $0x48] sm:$0xf]
        %v294 = vld [vmem:[#allocation2 + $0x4c] sm:$0xf]
        %v295 = vld [vmem:[#allocation2 + $0x50] sm:$0xf]
        %v296 = vld [vmem:[#allocation2 + $0x54] sm:$0xf]
        %v297 = vld [vmem:[#allocation2 + $0x58] sm:$0xf]
        %v298 = vld [vmem:[#allocation2 + $0x5c] sm:$0xf]
        %v299 = vld [vmem:[#allocation2 + $0x60] sm:$0xf]
        %v300 = vld [vmem:[#allocation2 + $0x64] sm:$0xf]
        %v301 = vld [vmem:[#allocation2 + $0x68] sm:$0xf]
        %v302 = vld [vmem:[#allocation2 + $0x6c] sm:$0xf]
        %v303 = vld [vmem:[#allocation2 + $0x70] sm:$0xf]
        %v304 = vld [vmem:[#allocation2 + $0x74] sm:$0xf]
        %v305 = vld [vmem:[#allocation2 + $0x78] sm:$0xf]
        %v306 = vld [vmem:[#allocation2 + $0x7c] sm:$0xf]
        %v307 = vld [vmem:[#allocation2 + $0x80] sm:$0xf]
        %v308 = vld [vmem:[#allocation2 + $0x84] sm:$0xf]
        %v309 = vld [vmem:[#allocation2 + $0x88] sm:$0xf]
        %v310 = vld [vmem:[#allocation2 + $0x8c] sm:$0xf]
        %v311 = vld [vmem:[#allocation2 + $0x90] sm:$0xf]
        %v312 = vld [vmem:[#allocation2 + $0x94] sm:$0xf]
        %v313 = vld [vmem:[#allocation2 + $0x98] sm:$0xf]
        %v314 = vld [vmem:[#allocation2 + $0x9c] sm:$0xf]
        %v315 = vld [vmem:[#allocation2 + $0xa0] sm:$0xf]
        %v316 = vld [vmem:[#allocation2 + $0xa4] sm:$0xf]
        %v317 = vld [vmem:[#allocation2 + $0xa8] sm:$0xf]
        %v318 = vld [vmem:[#allocation2 + $0xac] sm:$0xf]
        %v319 = vld [vmem:[#allocation2 + $0xb0] sm:$0xf]
        %v320 = vld [vmem:[#allocation2 + $0xb4] sm:$0xf]
        %v321 = vld [vmem:[#allocation2 + $0xb8] sm:$0xf]
        %v322 = vld [vmem:[#allocation2 + $0xbc] sm:$0xf]
        %v323 = vld [vmem:[%s2] sm:$0xff]
        %v324 = vld [vmem:[%s2 + $0x8] sm:$0xff]
        %v325 = vld [vmem:[%s2 + $0x10] sm:$0xff]
        %v326 = vld [vmem:[%s2 + $0x18] sm:$0xff]
        %v327 = vld [vmem:[%s2 + $0x20] sm:$0xff]
        %v328 = vld [vmem:[%s2 + $0x28] sm:$0xff]
        %v329 = vld [vmem:[%s2 + $0x30] sm:$0xff]
        %v330 = vld [vmem:[%s2 + $0x38] sm:$0xff]
        %v331 = vld [vmem:[%s2 + $0x40] sm:$0xff]
        %v332 = vld [vmem:[%s2 + $0x48] sm:$0xff]
        %v333 = vld [vmem:[%s2 + $0x50] sm:$0xff]
        %v334 = vld [vmem:[%s2 + $0x58] sm:$0xff]
        %v335 = vld [vmem:[%s2 + $0x60] sm:$0xff]
        %v336 = vld [vmem:[%s2 + $0x68] sm:$0xff]
        %v337 = vld [vmem:[%s2 + $0x70] sm:$0xff]
        %v338 = vld [vmem:[%s2 + $0x78] sm:$0xff]
        %v339 = vld [vmem:[%s2 + $0x80] sm:$0xff]
        %v340 = vld [vmem:[%s2 + $0x88] sm:$0xff]
        %v341 = vld [vmem:[%s2 + $0x90] sm:$0xff]
        %v342 = vld [vmem:[%s2 + $0x98] sm:$0xff]
        %v343 = vld [vmem:[%s2 + $0xa0] sm:$0xff]
        %v344 = vld [vmem:[%s2 + $0xa8] sm:$0xff]
        %v345 = vld [vmem:[%s2 + $0xb0] sm:$0xff]
        %v346 = vld [vmem:[%s2 + $0xb8] sm:$0xff]
        %v347 = vld [vmem:[%s2 + $0xc0] sm:$0xff]
        %v348 = vld [vmem:[%s2 + $0xc8] sm:$0xff]
        %v349 = vld [vmem:[%s2 + $0xd0] sm:$0xff]
        %v350 = vld [vmem:[%s2 + $0xd8] sm:$0xff]
        %v351 = vld [vmem:[%s2 + $0xe0] sm:$0xff]
        %v352 = vld [vmem:[%s2 + $0xe8] sm:$0xff]
        %v353 = vld [vmem:[%s2 + $0xf0] sm:$0xff]
        %v354 = vld [vmem:[%s2 + $0xf8] sm:$0xff]
        %v355 = vld [vmem:[%s2 + $0x100] sm:$0xff]
        %v356 = vld [vmem:[%s2 + $0x108] sm:$0xff]
        %v357 = vld [vmem:[%s2 + $0x110] sm:$0xff]
        %v358 = vld [vmem:[%s2 + $0x118] sm:$0xff]
        %v359 = vld [vmem:[%s2 + $0x120] sm:$0xff]
        %v360 = vld [vmem:[%s2 + $0x128] sm:$0xff]
        %v361 = vld [vmem:[%s2 + $0x130] sm:$0xff]
        %v362 = vld [vmem:[%s2 + $0x138] sm:$0xff]
        %v363 = vld [vmem:[%s2 + $0x140] sm:$0xff]
        %v364 = vld [vmem:[%s2 + $0x148] sm:$0xff]
        %v365 = vld [vmem:[%s2 + $0x150] sm:$0xff]
        %v366 = vld [vmem:[%s2 + $0x158] sm:$0xff]
        %v367 = vld [vmem:[%s2 + $0x160] sm:$0xff]
        %v368 = vld [vmem:[%s2 + $0x168] sm:$0xff]
        %v369 = vld [vmem:[%s2 + $0x170] sm:$0xff]
        %v370 = vld [vmem:[%s2 + $0x178] sm:$0xff]
        %372 = vset.pattern.permute.xlu0 0
        %373 = vperm.xlu0 %372, %v323
        %v374 = vpop.permute.xlu0 %373
        %377 = vset.pattern.permute.xlu0 0
        %378 = vperm.xlu0 %377, %v324
        %v379 = vpop.permute.xlu0 %378
        %382 = vset.pattern.permute.xlu0 0
        %383 = vperm.xlu0 %382, %v325
        %v384 = vpop.permute.xlu0 %383
        %387 = vset.pattern.permute.xlu0 0
        %388 = vperm.xlu0 %387, %v326
        %v389 = vpop.permute.xlu0 %388
        %392 = vset.pattern.permute.xlu0 0
        %393 = vperm.xlu0 %392, %v327
        %v394 = vpop.permute.xlu0 %393
        %397 = vset.pattern.permute.xlu0 0
        %398 = vperm.xlu0 %397, %v328
        %v399 = vpop.permute.xlu0 %398
        %402 = vset.pattern.permute.xlu0 0
        %403 = vperm.xlu0 %402, %v329
        %v404 = vpop.permute.xlu0 %403
        %407 = vset.pattern.permute.xlu0 0
        %408 = vperm.xlu0 %407, %v330
        %v409 = vpop.permute.xlu0 %408
        %412 = vset.pattern.permute.xlu0 0
        %413 = vperm.xlu0 %412, %v331
        %v414 = vpop.permute.xlu0 %413
        %417 = vset.pattern.permute.xlu0 0
        %418 = vperm.xlu0 %417, %v332
        %v419 = vpop.permute.xlu0 %418
        %422 = vset.pattern.permute.xlu0 0
        %423 = vperm.xlu0 %422, %v333
        %v424 = vpop.permute.xlu0 %423
        %427 = vset.pattern.permute.xlu0 0
        %428 = vperm.xlu0 %427, %v334
        %v429 = vpop.permute.xlu0 %428
        %432 = vset.pattern.permute.xlu0 0
        %433 = vperm.xlu0 %432, %v335
        %v434 = vpop.permute.xlu0 %433
        %437 = vset.pattern.permute.xlu0 0
        %438 = vperm.xlu0 %437, %v336
        %v439 = vpop.permute.xlu0 %438
        %442 = vset.pattern.permute.xlu0 0
        %443 = vperm.xlu0 %442, %v337
        %v444 = vpop.permute.xlu0 %443
        %447 = vset.pattern.permute.xlu0 0
        %448 = vperm.xlu0 %447, %v338
        %v449 = vpop.permute.xlu0 %448
        %452 = vset.pattern.permute.xlu0 0
        %453 = vperm.xlu0 %452, %v339
        %v454 = vpop.permute.xlu0 %453
        %457 = vset.pattern.permute.xlu0 0
        %458 = vperm.xlu0 %457, %v340
        %v459 = vpop.permute.xlu0 %458
        %462 = vset.pattern.permute.xlu0 0
        %463 = vperm.xlu0 %462, %v341
        %v464 = vpop.permute.xlu0 %463
        %467 = vset.pattern.permute.xlu0 0
        %468 = vperm.xlu0 %467, %v342
        %v469 = vpop.permute.xlu0 %468
        %472 = vset.pattern.permute.xlu0 0
        %473 = vperm.xlu0 %472, %v343
        %v474 = vpop.permute.xlu0 %473
        %477 = vset.pattern.permute.xlu0 0
        %478 = vperm.xlu0 %477, %v344
        %v479 = vpop.permute.xlu0 %478
        %482 = vset.pattern.permute.xlu0 0
        %483 = vperm.xlu0 %482, %v345
        %v484 = vpop.permute.xlu0 %483
        %487 = vset.pattern.permute.xlu0 0
        %488 = vperm.xlu0 %487, %v346
        %v489 = vpop.permute.xlu0 %488
        %492 = vset.pattern.permute.xlu0 0
        %493 = vperm.xlu0 %492, %v347
        %v494 = vpop.permute.xlu0 %493
        %497 = vset.pattern.permute.xlu0 0
        %498 = vperm.xlu0 %497, %v348
        %v499 = vpop.permute.xlu0 %498
        %502 = vset.pattern.permute.xlu0 0
        %503 = vperm.xlu0 %502, %v349
        %v504 = vpop.permute.xlu0 %503
        %507 = vset.pattern.permute.xlu0 0
        %508 = vperm.xlu0 %507, %v350
        %v509 = vpop.permute.xlu0 %508
        %512 = vset.pattern.permute.xlu0 0
        %513 = vperm.xlu0 %512, %v351
        %v514 = vpop.permute.xlu0 %513
        %517 = vset.pattern.permute.xlu0 0
        %518 = vperm.xlu0 %517, %v352
        %v519 = vpop.permute.xlu0 %518
        %522 = vset.pattern.permute.xlu0 0
        %523 = vperm.xlu0 %522, %v353
        %v524 = vpop.permute.xlu0 %523
        %527 = vset.pattern.permute.xlu0 0
        %528 = vperm.xlu0 %527, %v354
        %v529 = vpop.permute.xlu0 %528
        %532 = vset.pattern.permute.xlu0 0
        %533 = vperm.xlu0 %532, %v355
        %v534 = vpop.permute.xlu0 %533
        %537 = vset.pattern.permute.xlu0 0
        %538 = vperm.xlu0 %537, %v356
        %v539 = vpop.permute.xlu0 %538
        %542 = vset.pattern.permute.xlu0 0
        %543 = vperm.xlu0 %542, %v357
        %v544 = vpop.permute.xlu0 %543
        %547 = vset.pattern.permute.xlu0 0
        %548 = vperm.xlu0 %547, %v358
        %v549 = vpop.permute.xlu0 %548
        %552 = vset.pattern.permute.xlu0 0
        %553 = vperm.xlu0 %552, %v359
        %v554 = vpop.permute.xlu0 %553
        %557 = vset.pattern.permute.xlu0 0
        %558 = vperm.xlu0 %557, %v360
        %v559 = vpop.permute.xlu0 %558
        %562 = vset.pattern.permute.xlu0 0
        %563 = vperm.xlu0 %562, %v361
        %v564 = vpop.permute.xlu0 %563
        %567 = vset.pattern.permute.xlu0 0
        %568 = vperm.xlu0 %567, %v362
        %v569 = vpop.permute.xlu0 %568
        %572 = vset.pattern.permute.xlu0 0
        %573 = vperm.xlu0 %572, %v363
        %v574 = vpop.permute.xlu0 %573
        %577 = vset.pattern.permute.xlu0 0
        %578 = vperm.xlu0 %577, %v364
        %v579 = vpop.permute.xlu0 %578
        %582 = vset.pattern.permute.xlu0 0
        %583 = vperm.xlu0 %582, %v365
        %v584 = vpop.permute.xlu0 %583
        %587 = vset.pattern.permute.xlu0 0
        %588 = vperm.xlu0 %587, %v366
        %v589 = vpop.permute.xlu0 %588
        %592 = vset.pattern.permute.xlu0 0
        %593 = vperm.xlu0 %592, %v367
        %v594 = vpop.permute.xlu0 %593
        %597 = vset.pattern.permute.xlu0 0
        %598 = vperm.xlu0 %597, %v368
        %v599 = vpop.permute.xlu0 %598
        %602 = vset.pattern.permute.xlu0 0
        %603 = vperm.xlu0 %602, %v369
        %v604 = vpop.permute.xlu0 %603
        %607 = vset.pattern.permute.xlu0 0
        %608 = vperm.xlu0 %607, %v370
        %v609 = vpop.permute.xlu0 %608
        %v659 = vunpack.c.l.b16 %v275
        %v660 = vunpack.c.l.b16 %v276
        %v661 = vunpack.c.l.b16 %v277
        %v662 = vunpack.c.l.b16 %v278
        %v663 = vunpack.c.l.b16 %v279
        %v664 = vunpack.c.l.b16 %v280
        %v665 = vunpack.c.l.b16 %v281
        %v666 = vunpack.c.l.b16 %v282
        %v667 = vunpack.c.l.b16 %v283
        %v668 = vunpack.c.l.b16 %v284
        %v669 = vunpack.c.l.b16 %v285
        %v670 = vunpack.c.l.b16 %v286
        %v671 = vunpack.c.l.b16 %v287
        %v672 = vunpack.c.l.b16 %v288
        %v673 = vunpack.c.l.b16 %v289
        %v674 = vunpack.c.l.b16 %v290
        %v675 = vunpack.c.l.b16 %v291
        %v676 = vunpack.c.l.b16 %v292
        %v677 = vunpack.c.l.b16 %v293
        %v678 = vunpack.c.l.b16 %v294
        %v679 = vunpack.c.l.b16 %v295
        %v680 = vunpack.c.l.b16 %v296
        %v681 = vunpack.c.l.b16 %v297
        %v682 = vunpack.c.l.b16 %v298
        %v683 = vunpack.c.l.b16 %v299
        %v684 = vunpack.c.l.b16 %v300
        %v685 = vunpack.c.l.b16 %v301
        %v686 = vunpack.c.l.b16 %v302
        %v687 = vunpack.c.l.b16 %v303
        %v688 = vunpack.c.l.b16 %v304
        %v689 = vunpack.c.l.b16 %v305
        %v690 = vunpack.c.l.b16 %v306
        %v691 = vunpack.c.l.b16 %v307
        %v692 = vunpack.c.l.b16 %v308
        %v693 = vunpack.c.l.b16 %v309
        %v694 = vunpack.c.l.b16 %v310
        %v695 = vunpack.c.l.b16 %v311
        %v696 = vunpack.c.l.b16 %v312
        %v697 = vunpack.c.l.b16 %v313
        %v698 = vunpack.c.l.b16 %v314
        %v699 = vunpack.c.l.b16 %v315
        %v700 = vunpack.c.l.b16 %v316
        %v701 = vunpack.c.l.b16 %v317
        %v702 = vunpack.c.l.b16 %v318
        %v703 = vunpack.c.l.b16 %v319
        %v704 = vunpack.c.l.b16 %v320
        %v705 = vunpack.c.l.b16 %v321
        %v706 = vunpack.c.l.b16 %v322
        %v707 = vpack.c.b16 %v660, %v659
        %v708 = vpack.c.b16 %v662, %v661
        %v709 = vpack.c.b16 %v664, %v663
        %v710 = vpack.c.b16 %v666, %v665
        %v711 = vpack.c.b16 %v668, %v667
        %v712 = vpack.c.b16 %v670, %v669
        %v713 = vpack.c.b16 %v672, %v671
        %v714 = vpack.c.b16 %v674, %v673
        %v715 = vpack.c.b16 %v676, %v675
        %v716 = vpack.c.b16 %v678, %v677
        %v717 = vpack.c.b16 %v680, %v679
        %v718 = vpack.c.b16 %v682, %v681
        %v719 = vpack.c.b16 %v684, %v683
        %v720 = vpack.c.b16 %v686, %v685
        %v721 = vpack.c.b16 %v688, %v687
        %v722 = vpack.c.b16 %v690, %v689
        %v723 = vpack.c.b16 %v692, %v691
        %v724 = vpack.c.b16 %v694, %v693
        %v725 = vpack.c.b16 %v696, %v695
        %v726 = vpack.c.b16 %v698, %v697
        %v727 = vpack.c.b16 %v700, %v699
        %v728 = vpack.c.b16 %v702, %v701
        %v729 = vpack.c.b16 %v704, %v703
        %v730 = vpack.c.b16 %v706, %v705
        %755 = vmatprep.subr.bf16.mxu0 0
        %756 = vmatpush1.bf16.msra.mxu0 %v274
        %757 = vmatprep.subr.bf16.mxu0 0
        %758 = vmatpush1.bf16.msra.mxu0 %v273
        %759 = vmatprep.subr.bf16.mxu0 0
        %760 = vmatpush1.bf16.msra.mxu0 %v272
        %761 = vmatprep.subr.bf16.mxu0 0
        %762 = vmatpush1.bf16.msra.mxu0 %v271
        %763 = vmatprep.subr.bf16.mxu0 0
        %764 = vmatpush1.bf16.msra.mxu0 %v270
        %765 = vmatprep.subr.bf16.mxu0 0
        %766 = vmatpush1.bf16.msra.mxu0 %v269
        %767 = vmatprep.subr.bf16.mxu0 0
        %768 = vmatpush1.bf16.msra.mxu0 %v268
        %769 = vmatprep.subr.bf16.mxu0 0
        %770 = vmatpush1.bf16.msra.mxu0 %v267
        %771 = vmatprep.subr.bf16.mxu0 0
        %772 = vmatpush2.bf16.msra.mxu0 0
        %773 = vmatprep.subr.bf16.mxu0 0
        %774 = vmatpush2.bf16.msra.mxu0 0
        %775 = vmatprep.subr.bf16.mxu0 0
        %776 = vmatpush2.bf16.msra.mxu0 0
        %777 = vmatprep.subr.bf16.mxu0 0
        %778 = vmatpush2.bf16.msra.mxu0 0
        %779 = vmatprep.subr.bf16.mxu0 0
        %780 = vmatpush2.bf16.msra.mxu0 0
        %781 = vmatprep.subr.bf16.mxu0 0
        %782 = vmatpush2.bf16.msra.mxu0 0
        %783 = vmatprep.subr.bf16.mxu0 0
        %784 = vmatpush2.bf16.msra.mxu0 0
        %785 = vmatprep.subr.bf16.mxu0 0
        %786 = vmatpush2.bf16.msra.mxu0 0
        %787 = vmatprep.mubr.bf16.mxu0 0
        %788 = vmatmul.mubr.bf16.gmra.mxu0 %v707
        %v789 = vpop.f32.mrf.mxu0
        %v790 = vadd.f32 %v374, %v789
        %v791 = vpop.f32.mrf.mxu0
        %v792 = vpop.f32.mrf.mxu0
        %v793 = vadd.f32 %v379, %v792
        %v794 = vpop.f32.mrf.mxu0
        %795 = vmatprep.mubr.bf16.mxu0 0
        %796 = vmatmul.mubr.bf16.gmra.mxu0 %v708
        %v797 = vpop.f32.mrf.mxu0
        %v798 = vadd.f32 %v384, %v797
        %v799 = vpop.f32.mrf.mxu0
        %v800 = vpop.f32.mrf.mxu0
        %v801 = vadd.f32 %v389, %v800
        %v802 = vpop.f32.mrf.mxu0
        %803 = vmatprep.mubr.bf16.mxu0 0
        %804 = vmatmul.mubr.bf16.gmra.mxu0 %v709
        %v805 = vpop.f32.mrf.mxu0
        %v806 = vadd.f32 %v394, %v805
        %v807 = vpop.f32.mrf.mxu0
        %v808 = vpop.f32.mrf.mxu0
        %v809 = vadd.f32 %v399, %v808
        %v810 = vpop.f32.mrf.mxu0
        %811 = vmatprep.mubr.bf16.mxu0 0
        %812 = vmatmul.mubr.bf16.gmra.mxu0 %v710
        %v813 = vpop.f32.mrf.mxu0
        %v814 = vadd.f32 %v404, %v813
        %v815 = vpop.f32.mrf.mxu0
        %v816 = vpop.f32.mrf.mxu0
        %v817 = vadd.f32 %v409, %v816
        %v818 = vpop.f32.mrf.mxu0
        %819 = vmatprep.mubr.bf16.mxu0 0
        %820 = vmatmul.mubr.bf16.gmra.mxu0 %v711
        %v821 = vpop.f32.mrf.mxu0
        %v822 = vadd.f32 %v414, %v821
        %v823 = vpop.f32.mrf.mxu0
        %v824 = vpop.f32.mrf.mxu0
        %v825 = vadd.f32 %v419, %v824
        %v826 = vpop.f32.mrf.mxu0
        %827 = vmatprep.mubr.bf16.mxu0 0
        %828 = vmatmul.mubr.bf16.gmra.mxu0 %v712
        %v829 = vpop.f32.mrf.mxu0
        %v830 = vadd.f32 %v424, %v829
        %v831 = vpop.f32.mrf.mxu0
        %v832 = vpop.f32.mrf.mxu0
        %v833 = vadd.f32 %v429, %v832
        %v834 = vpop.f32.mrf.mxu0
        %835 = vmatprep.mubr.bf16.mxu0 0
        %836 = vmatmul.mubr.bf16.gmra.mxu0 %v713
        %v837 = vpop.f32.mrf.mxu0
        %v838 = vadd.f32 %v434, %v837
        %v839 = vpop.f32.mrf.mxu0
        %v840 = vpop.f32.mrf.mxu0
        %v841 = vadd.f32 %v439, %v840
        %v842 = vpop.f32.mrf.mxu0
        %843 = vmatprep.mubr.bf16.mxu0 0
        %844 = vmatmul.mubr.bf16.gmra.mxu0 %v714
        %v845 = vpop.f32.mrf.mxu0
        %v846 = vadd.f32 %v444, %v845
        %v847 = vpop.f32.mrf.mxu0
        %v848 = vpop.f32.mrf.mxu0
        %v849 = vadd.f32 %v449, %v848
        %v850 = vpop.f32.mrf.mxu0
        %851 = vmatprep.mubr.bf16.mxu0 0
        %852 = vmatmul.mubr.bf16.gmra.mxu0 %v715
        %v853 = vpop.f32.mrf.mxu0
        %v854 = vadd.f32 %v454, %v853
        %v855 = vpop.f32.mrf.mxu0
        %v856 = vpop.f32.mrf.mxu0
        %v857 = vadd.f32 %v459, %v856
        %v858 = vpop.f32.mrf.mxu0
        %859 = vmatprep.mubr.bf16.mxu0 0
        %860 = vmatmul.mubr.bf16.gmra.mxu0 %v716
        %v861 = vpop.f32.mrf.mxu0
        %v862 = vadd.f32 %v464, %v861
        %v863 = vpop.f32.mrf.mxu0
        %v864 = vpop.f32.mrf.mxu0
        %v865 = vadd.f32 %v469, %v864
        %v866 = vpop.f32.mrf.mxu0
        %867 = vmatprep.mubr.bf16.mxu0 0
        %868 = vmatmul.mubr.bf16.gmra.mxu0 %v717
        %v869 = vpop.f32.mrf.mxu0
        %v870 = vadd.f32 %v474, %v869
        %v871 = vpop.f32.mrf.mxu0
        %v872 = vpop.f32.mrf.mxu0
        %v873 = vadd.f32 %v479, %v872
        %v874 = vpop.f32.mrf.mxu0
        %875 = vmatprep.mubr.bf16.mxu0 0
        %876 = vmatmul.mubr.bf16.gmra.mxu0 %v718
        %v877 = vpop.f32.mrf.mxu0
        %v878 = vadd.f32 %v484, %v877
        %v879 = vpop.f32.mrf.mxu0
        %v880 = vpop.f32.mrf.mxu0
        %v881 = vadd.f32 %v489, %v880
        %v882 = vpop.f32.mrf.mxu0
        %883 = vmatprep.mubr.bf16.mxu0 0
        %884 = vmatmul.mubr.bf16.gmra.mxu0 %v719
        %v885 = vpop.f32.mrf.mxu0
        %v886 = vadd.f32 %v494, %v885
        %v887 = vpop.f32.mrf.mxu0
        %v888 = vpop.f32.mrf.mxu0
        %v889 = vadd.f32 %v499, %v888
        %v890 = vpop.f32.mrf.mxu0
        %891 = vmatprep.mubr.bf16.mxu0 0
        %892 = vmatmul.mubr.bf16.gmra.mxu0 %v720
        %v893 = vpop.f32.mrf.mxu0
        %v894 = vadd.f32 %v504, %v893
        %v895 = vpop.f32.mrf.mxu0
        %v896 = vpop.f32.mrf.mxu0
        %v897 = vadd.f32 %v509, %v896
        %v898 = vpop.f32.mrf.mxu0
        %899 = vmatprep.mubr.bf16.mxu0 0
        %900 = vmatmul.mubr.bf16.gmra.mxu0 %v721
        %v901 = vpop.f32.mrf.mxu0
        %v902 = vadd.f32 %v514, %v901
        %v903 = vpop.f32.mrf.mxu0
        %v904 = vpop.f32.mrf.mxu0
        %v905 = vadd.f32 %v519, %v904
        %v906 = vpop.f32.mrf.mxu0
        %907 = vmatprep.mubr.bf16.mxu0 0
        %908 = vmatmul.mubr.bf16.gmra.mxu0 %v722
        %v909 = vpop.f32.mrf.mxu0
        %v910 = vadd.f32 %v524, %v909
        %v911 = vpop.f32.mrf.mxu0
        %v912 = vpop.f32.mrf.mxu0
        %v913 = vadd.f32 %v529, %v912
        %v914 = vpop.f32.mrf.mxu0
        %915 = vmatprep.mubr.bf16.mxu0 0
        %916 = vmatmul.mubr.bf16.gmra.mxu0 %v723
        %v917 = vpop.f32.mrf.mxu0
        %v918 = vadd.f32 %v534, %v917
        %v919 = vpop.f32.mrf.mxu0
        %v920 = vpop.f32.mrf.mxu0
        %v921 = vadd.f32 %v539, %v920
        %v922 = vpop.f32.mrf.mxu0
        %923 = vmatprep.mubr.bf16.mxu0 0
        %924 = vmatmul.mubr.bf16.gmra.mxu0 %v724
        %v925 = vpop.f32.mrf.mxu0
        %v926 = vadd.f32 %v544, %v925
        %v927 = vpop.f32.mrf.mxu0
        %v928 = vpop.f32.mrf.mxu0
        %v929 = vadd.f32 %v549, %v928
        %v930 = vpop.f32.mrf.mxu0
        %931 = vmatprep.mubr.bf16.mxu0 0
        %932 = vmatmul.mubr.bf16.gmra.mxu0 %v725
        %v933 = vpop.f32.mrf.mxu0
        %v934 = vadd.f32 %v554, %v933
        %v935 = vpop.f32.mrf.mxu0
        %v936 = vpop.f32.mrf.mxu0
        %v937 = vadd.f32 %v559, %v936
        %v938 = vpop.f32.mrf.mxu0
        %939 = vmatprep.mubr.bf16.mxu0 0
        %940 = vmatmul.mubr.bf16.gmra.mxu0 %v726
        %v941 = vpop.f32.mrf.mxu0
        %v942 = vadd.f32 %v564, %v941
        %v943 = vpop.f32.mrf.mxu0
        %v944 = vpop.f32.mrf.mxu0
        %v945 = vadd.f32 %v569, %v944
        %v946 = vpop.f32.mrf.mxu0
        %947 = vmatprep.mubr.bf16.mxu0 0
        %948 = vmatmul.mubr.bf16.gmra.mxu0 %v727
        %v949 = vpop.f32.mrf.mxu0
        %v950 = vadd.f32 %v574, %v949
        %v951 = vpop.f32.mrf.mxu0
        %v952 = vpop.f32.mrf.mxu0
        %v953 = vadd.f32 %v579, %v952
        %v954 = vpop.f32.mrf.mxu0
        %955 = vmatprep.mubr.bf16.mxu0 0
        %956 = vmatmul.mubr.bf16.gmra.mxu0 %v728
        %v957 = vpop.f32.mrf.mxu0
        %v958 = vadd.f32 %v584, %v957
        %v959 = vpop.f32.mrf.mxu0
        %v960 = vpop.f32.mrf.mxu0
        %v961 = vadd.f32 %v589, %v960
        %v962 = vpop.f32.mrf.mxu0
        %963 = vmatprep.mubr.bf16.mxu0 0
        %964 = vmatmul.mubr.bf16.gmra.mxu0 %v729
        %v965 = vpop.f32.mrf.mxu0
        %v966 = vadd.f32 %v594, %v965
        %v967 = vpop.f32.mrf.mxu0
        %v968 = vpop.f32.mrf.mxu0
        %v969 = vadd.f32 %v599, %v968
        %v970 = vpop.f32.mrf.mxu0
        %971 = vmatprep.mubr.bf16.mxu0 0
        %972 = vmatmul.mubr.bf16.gmra.mxu0 %v730
        %v973 = vpop.f32.mrf.mxu0
        %v974 = vadd.f32 %v604, %v973
        %v975 = vpop.f32.mrf.mxu0
        %v976 = vpop.f32.mrf.mxu0
        %v977 = vadd.f32 %v609, %v976
        %v978 = vpop.f32.mrf.mxu0
        %979 = vdwg.mxu0
        %v980 = vpack.c.bf16 %v793, %v790
        %v981 = vpack.c.bf16 %v801, %v798
        %v982 = vpack.c.bf16 %v809, %v806
        %v983 = vpack.c.bf16 %v817, %v814
        %v984 = vpack.c.bf16 %v825, %v822
        %v985 = vpack.c.bf16 %v833, %v830
        %v986 = vpack.c.bf16 %v841, %v838
        %v987 = vpack.c.bf16 %v849, %v846
        %988 = vxpose.xlu0.c.b16.start [1/8] %v980, 128
        %989 = vxpose.xlu0.c.b16.cont [2/8] %v981, 128
        %990 = vxpose.xlu0.c.b16.cont [3/8] %v982, 128
        %991 = vxpose.xlu0.c.b16.cont [4/8] %v983, 128
        %992 = vxpose.xlu0.c.b16.cont [5/8] %v984, 128
        %993 = vxpose.xlu0.c.b16.cont [6/8] %v985, 128
        %994 = vxpose.xlu0.c.b16.cont [7/8] %v986, 128
        %995 = vxpose.xlu0.c.b16.end [8/8] %v987, 128
        %v996 = vpop.trf.xlu0
        %v997 = vpop.trf.xlu0
        %v998 = vpop.trf.xlu0
        %v999 = vpop.trf.xlu0
        %v1000 = vpop.trf.xlu0
        %v1001 = vpop.trf.xlu0
        %v1002 = vpop.trf.xlu0
        %v1003 = vpop.trf.xlu0
        %v1012 = vunpack.c.l.b16 %v996
        %v1013 = vunpack.c.h.b16 %v996
        %v1014 = vunpack.c.l.b16 %v997
        %v1015 = vunpack.c.h.b16 %v997
        %v1016 = vunpack.c.l.b16 %v998
        %v1017 = vunpack.c.h.b16 %v998
        %v1018 = vunpack.c.l.b16 %v999
        %v1019 = vunpack.c.h.b16 %v999
        %v1020 = vunpack.c.l.b16 %v1000
        %v1021 = vunpack.c.h.b16 %v1000
        %v1022 = vunpack.c.l.b16 %v1001
        %v1023 = vunpack.c.h.b16 %v1001
        %v1024 = vunpack.c.l.b16 %v1002
        %v1025 = vunpack.c.h.b16 %v1002
        %v1026 = vunpack.c.l.b16 %v1003
        %v1027 = vunpack.c.h.b16 %v1003
        %v1028 = vpack.c.b16 %v1012, %v1012
        %v1029 = vpack.c.b16 %v1013, %v1013
        %v1030 = vpack.c.b16 %v1014, %v1014
        %v1031 = vpack.c.b16 %v1015, %v1015
        %v1032 = vpack.c.b16 %v1016, %v1016
        %v1033 = vpack.c.b16 %v1017, %v1017
        %v1034 = vpack.c.b16 %v1018, %v1018
        %v1035 = vpack.c.b16 %v1019, %v1019
        %v1036 = vpack.c.b16 %v1020, %v1020
        %v1037 = vpack.c.b16 %v1021, %v1021
        %v1038 = vpack.c.b16 %v1022, %v1022
        %v1039 = vpack.c.b16 %v1023, %v1023
        %v1040 = vpack.c.b16 %v1024, %v1024
        %v1041 = vpack.c.b16 %v1025, %v1025
        %v1042 = vpack.c.b16 %v1026, %v1026
        %v1043 = vpack.c.b16 %v1027, %v1027
        %1060 = vst [vmem:[%s233] sm:$0xf] %v1028
        %1061 = vst [vmem:[%s233 + $0x4] sm:$0xf] %v1029
        %1062 = vst [vmem:[%s233 + $0x8] sm:$0xf] %v1030
        %1063 = vst [vmem:[%s233 + $0xc] sm:$0xf] %v1031
        %1064 = vst [vmem:[%s233 + $0x10] sm:$0xf] %v1032
        %1065 = vst [vmem:[%s233 + $0x14] sm:$0xf] %v1033
        %1066 = vst [vmem:[%s233 + $0x18] sm:$0xf] %v1034
        %1067 = vst [vmem:[%s233 + $0x1c] sm:$0xf] %v1035
        %1068 = vst [vmem:[%s233 + $0x20] sm:$0xf] %v1036
        %1069 = vst [vmem:[%s233 + $0x24] sm:$0xf] %v1037
        %1070 = vst [vmem:[%s233 + $0x28] sm:$0xf] %v1038
        %1071 = vst [vmem:[%s233 + $0x2c] sm:$0xf] %v1039
        %1072 = vst [vmem:[%s233 + $0x30] sm:$0xf] %v1040
        %1073 = vst [vmem:[%s233 + $0x34] sm:$0xf] %v1041
        %1074 = vst [vmem:[%s233 + $0x38] sm:$0xf] %v1042
        %1075 = vst [vmem:[%s233 + $0x3c] sm:$0xf] %v1043
        %v1076 = vpack.c.bf16 %v857, %v854
        %v1077 = vpack.c.bf16 %v865, %v862
        %v1078 = vpack.c.bf16 %v873, %v870
        %v1079 = vpack.c.bf16 %v881, %v878
        %v1080 = vpack.c.bf16 %v889, %v886
        %v1081 = vpack.c.bf16 %v897, %v894
        %v1082 = vpack.c.bf16 %v905, %v902
        %v1083 = vpack.c.bf16 %v913, %v910
        %v1084 = vpack.c.bf16 %v921, %v918
        %v1085 = vpack.c.bf16 %v929, %v926
        %v1086 = vpack.c.bf16 %v937, %v934
        %v1087 = vpack.c.bf16 %v945, %v942
        %v1088 = vpack.c.bf16 %v953, %v950
        %v1089 = vpack.c.bf16 %v961, %v958
        %v1090 = vpack.c.bf16 %v969, %v966
        %v1091 = vpack.c.bf16 %v977, %v974
        %v1108 = vunpack.c.l.b16 %v1076
        %v1109 = vunpack.c.h.b16 %v1076
        %v1110 = vunpack.c.l.b16 %v1077
        %v1111 = vunpack.c.h.b16 %v1077
        %v1112 = vunpack.c.l.b16 %v1078
        %v1113 = vunpack.c.h.b16 %v1078
        %v1114 = vunpack.c.l.b16 %v1079
        %v1115 = vunpack.c.h.b16 %v1079
        %v1116 = vunpack.c.l.b16 %v1080
        %v1117 = vunpack.c.h.b16 %v1080
        %v1118 = vunpack.c.l.b16 %v1081
        %v1119 = vunpack.c.h.b16 %v1081
        %v1120 = vunpack.c.l.b16 %v1082
        %v1121 = vunpack.c.h.b16 %v1082
        %v1122 = vunpack.c.l.b16 %v1083
        %v1123 = vunpack.c.h.b16 %v1083
        %v1124 = vunpack.c.l.b16 %v1084
        %v1125 = vunpack.c.h.b16 %v1084
        %v1126 = vunpack.c.l.b16 %v1085
        %v1127 = vunpack.c.h.b16 %v1085
        %v1128 = vunpack.c.l.b16 %v1086
        %v1129 = vunpack.c.h.b16 %v1086
        %v1130 = vunpack.c.l.b16 %v1087
        %v1131 = vunpack.c.h.b16 %v1087
        %v1132 = vunpack.c.l.b16 %v1088
        %v1133 = vunpack.c.h.b16 %v1088
        %v1134 = vunpack.c.l.b16 %v1089
        %v1135 = vunpack.c.h.b16 %v1089
        %v1136 = vunpack.c.l.b16 %v1090
        %v1137 = vunpack.c.h.b16 %v1090
        %v1138 = vunpack.c.l.b16 %v1091
        %v1139 = vunpack.c.h.b16 %v1091
        %v1140 = vpack.c.b16 %v1108, %v1108
        %v1141 = vpack.c.b16 %v1109, %v1109
        %v1142 = vpack.c.b16 %v1110, %v1110
        %v1143 = vpack.c.b16 %v1111, %v1111
        %v1144 = vpack.c.b16 %v1112, %v1112
        %v1145 = vpack.c.b16 %v1113, %v1113
        %v1146 = vpack.c.b16 %v1114, %v1114
        %v1147 = vpack.c.b16 %v1115, %v1115
        %v1148 = vpack.c.b16 %v1116, %v1116
        %v1149 = vpack.c.b16 %v1117, %v1117
        %v1150 = vpack.c.b16 %v1118, %v1118
        %v1151 = vpack.c.b16 %v1119, %v1119
        %v1152 = vpack.c.b16 %v1120, %v1120
        %v1153 = vpack.c.b16 %v1121, %v1121
        %v1154 = vpack.c.b16 %v1122, %v1122
        %v1155 = vpack.c.b16 %v1123, %v1123
        %v1156 = vpack.c.b16 %v1124, %v1124
        %v1157 = vpack.c.b16 %v1125, %v1125
        %v1158 = vpack.c.b16 %v1126, %v1126
        %v1159 = vpack.c.b16 %v1127, %v1127
        %v1160 = vpack.c.b16 %v1128, %v1128
        %v1161 = vpack.c.b16 %v1129, %v1129
        %v1162 = vpack.c.b16 %v1130, %v1130
        %v1163 = vpack.c.b16 %v1131, %v1131
        %v1164 = vpack.c.b16 %v1132, %v1132
        %v1165 = vpack.c.b16 %v1133, %v1133
        %v1166 = vpack.c.b16 %v1134, %v1134
        %v1167 = vpack.c.b16 %v1135, %v1135
        %v1168 = vpack.c.b16 %v1136, %v1136
        %v1169 = vpack.c.b16 %v1137, %v1137
        %v1170 = vpack.c.b16 %v1138, %v1138
        %v1171 = vpack.c.b16 %v1139, %v1139
        %1204 = vst [vmem:[%s240] sm:$0xf] %v1140
        %1205 = vst [vmem:[%s240 + $0x4] sm:$0xf] %v1141
        %1206 = vst [vmem:[%s240 + $0x8] sm:$0xf] %v1142
        %1207 = vst [vmem:[%s240 + $0xc] sm:$0xf] %v1143
        %1208 = vst [vmem:[%s240 + $0x10] sm:$0xf] %v1144
        %1209 = vst [vmem:[%s240 + $0x14] sm:$0xf] %v1145
        %1210 = vst [vmem:[%s240 + $0x18] sm:$0xf] %v1146
        %1211 = vst [vmem:[%s240 + $0x1c] sm:$0xf] %v1147
        %1212 = vst [vmem:[%s240 + $0x20] sm:$0xf] %v1148
        %1213 = vst [vmem:[%s240 + $0x24] sm:$0xf] %v1149
        %1214 = vst [vmem:[%s240 + $0x28] sm:$0xf] %v1150
        %1215 = vst [vmem:[%s240 + $0x2c] sm:$0xf] %v1151
        %1216 = vst [vmem:[%s240 + $0x30] sm:$0xf] %v1152
        %1217 = vst [vmem:[%s240 + $0x34] sm:$0xf] %v1153
        %1218 = vst [vmem:[%s240 + $0x38] sm:$0xf] %v1154
        %1219 = vst [vmem:[%s240 + $0x3c] sm:$0xf] %v1155
        %1220 = vst [vmem:[%s240 + $0x40] sm:$0xf] %v1156
        %1221 = vst [vmem:[%s240 + $0x44] sm:$0xf] %v1157
        %1222 = vst [vmem:[%s240 + $0x48] sm:$0xf] %v1158
        %1223 = vst [vmem:[%s240 + $0x4c] sm:$0xf] %v1159
        %1224 = vst [vmem:[%s240 + $0x50] sm:$0xf] %v1160
        %1225 = vst [vmem:[%s240 + $0x54] sm:$0xf] %v1161
        %1226 = vst [vmem:[%s240 + $0x58] sm:$0xf] %v1162
        %1227 = vst [vmem:[%s240 + $0x5c] sm:$0xf] %v1163
        %1228 = vst [vmem:[%s240 + $0x60] sm:$0xf] %v1164
        %1229 = vst [vmem:[%s240 + $0x64] sm:$0xf] %v1165
        %1230 = vst [vmem:[%s240 + $0x68] sm:$0xf] %v1166
        %1231 = vst [vmem:[%s240 + $0x6c] sm:$0xf] %v1167
        %1232 = vst [vmem:[%s240 + $0x70] sm:$0xf] %v1168
        %1233 = vst [vmem:[%s240 + $0x74] sm:$0xf] %v1169
        %1234 = vst [vmem:[%s240 + $0x78] sm:$0xf] %v1170
        %1235 = vst [vmem:[%s240 + $0x7c] sm:$0xf] %v1171
        %s1236 = sand.u32 %s115, 1
        %s1237 = scalar_lea.sflag [#allocation4], %s1236
        %s1238 = sand.u32 %s115, 1
        %s1239 = smul.addr %s1238, 64
        %s1240 = scalar_lea.vmem [#allocation5], %s1239
        %s1241 = sand.u32 %s143, 1
        %s1242 = scalar_lea.sflag [#allocation7], %s1241
        %s1243 = sand.u32 %s143, 1
        %s1244 = smul.addr %s1243, 128
        %s1245 = scalar_lea.vmem [#allocation6], %s1244
        // Predicated region
        $region37: #{tpu_custom_call.1} parent=31 // pred_check
          %p1246 = pneg %p125
        $region38: #{tpu_custom_call.1} parent=31 // pred_check_branch
          %1248 = sbr.rel (%p1246) target = $region40
        $region39: #{tpu_custom_call.1} parent=31 // pred_region
          %s1249 = smul.u32 16, %s28
          %s1251 = ssub.s32 1024, 1024
          %1252 = vsyncadd %s1237, %s1251
          %s1253 = smul.addr %s27, 16
          %s1254 = sadd.s32 %s1249, %s1253
          %s1255 = smul.addr %s1254, 64
          %s1256 = scalar_lea.hbm %s3, %s1255
          %s1257 = sshll.u32 %s1240, 4
          %s1258 = int_to_ptr.vmem [resolvable:$true] %s1257
          %1263 = dma.vmem_to_hbm [thread:$0]  %s1258, 1024, %s1256, %s1237, 64, 64, 4
        $region40: #{tpu_custom_call.1} parent=31 // pred_fallthru
          _
        // Predicated region
        $region41: #{tpu_custom_call.1} parent=31 // pred_check
          %p1264 = pneg %p153
        $region42: #{tpu_custom_call.1} parent=31 // pred_check_branch
          %1266 = sbr.rel (%p1264) target = $region44
        $region43: #{tpu_custom_call.1} parent=31 // pred_region
          %s1268 = ssub.s32 2048, 2048
          %1269 = vsyncadd %s1242, %s1268
          %s1270 = smul.addr %s27, 32
          %s1271 = sadd.s32 %s28, %s1270
          %s1272 = smul.addr %s1271, 64
          %s1273 = scalar_lea.hbm %s4, %s1272
          %s1274 = sshll.u32 %s1245, 4
          %s1275 = int_to_ptr.vmem [resolvable:$true] %s1274
          %1280 = dma.vmem_to_hbm [thread:$0]  %s1275, 2048, %s1273, %s1242, 64, 64, 4
        $region44: #{tpu_custom_call.1} parent=31 // pred_fallthru
          _
      $region32: #{tpu_custom_call.1} parent=5 // pred_fallthru
        _
      %p1281 = scmp.le.s32.totalorder 2, %s18
      // Predicated region
      $region45: #{tpu_custom_call.1} parent=5 // pred_check
        %p1282 = pneg %p1281
      $region46: #{tpu_custom_call.1} parent=5 // pred_check_branch
        %1284 = sbr.rel (%p1282) target = $region48
      $region47: #{tpu_custom_call.1} parent=5 // pred_region
        %s1285 = ssub.s32 %s18, 2
        // Predicated region
        $region49: #{tpu_custom_call.1} parent=47 // pred_check
          %p1286 = pneg %p131
        $region50: #{tpu_custom_call.1} parent=47 // pred_check_branch
          %1288 = sbr.rel (%p1286) target = $region52
        $region51: #{tpu_custom_call.1} parent=47 // pred_region
          %s1289 = sand.u32 %s116, 1
          %s1290 = scalar_lea.sflag [#allocation4], %s1289
          %s1291 = sand.u32 %s116, 1
          %s1292 = smul.addr %s1291, 64
          %s1293 = scalar_lea.vmem [#allocation5], %s1292
          %1294 = dma.done %s1290, 1024
        $region52: #{tpu_custom_call.1} parent=47 // pred_fallthru
          _
        // Predicated region
        $region53: #{tpu_custom_call.1} parent=47 // pred_check
          %p1295 = pneg %p159
        $region54: #{tpu_custom_call.1} parent=47 // pred_check_branch
          %1297 = sbr.rel (%p1295) target = $region56
        $region55: #{tpu_custom_call.1} parent=47 // pred_region
          %s1298 = sand.u32 %s144, 1
          %s1299 = scalar_lea.sflag [#allocation7], %s1298
          %s1300 = sand.u32 %s144, 1
          %s1301 = smul.addr %s1300, 128
          %s1302 = scalar_lea.vmem [#allocation6], %s1301
          %1303 = dma.done %s1299, 2048
        $region56: #{tpu_custom_call.1} parent=47 // pred_fallthru
          _
      $region48: #{tpu_custom_call.1} parent=5 // pred_fallthru
        _
    $region6: #{tpu_custom_call.1} parent=1 // loop_footer
      %s22 = sadd.s32 1, %s18
    $region7: #{tpu_custom_call.1} parent=1 // loop_footer_branch
      %17 = sbr.rel target = $region3
    $region8: #{tpu_custom_call.1} parent=1 // loop_exit
      _
    %1304 = vsyncpa [#allocation3], 1
    %s1305 = scalar_lea.sflag [#allocation3], 1
    %1306 = vsyncpa %s1305, 1
    %1307 = vsyncpa [#allocation4], 1
    %s1308 = scalar_lea.sflag [#allocation4], 1
    %1309 = vsyncpa %s1308, 1
    %1310 = vsyncpa [#allocation7], 1
    %s1311 = scalar_lea.sflag [#allocation7], 1
    %1312 = vsyncpa %s1311, 1

</llo_original>
